<compile_context>
chip_gen: v5e
topology: v5e:2x2
jax: 0.10.0
libtpu: 0.0.40
codegen_flags: <defaults>
</compile_context>

<pallas_src>
import functools

import jax
import jax.numpy as jnp
from jax.experimental import pallas as pl
from jax.experimental.pallas import tpu as pltpu


def _vmem_capacity_bytes():
    """Physical VMEM per TensorCore, with a conservative (v7x) fallback."""
    try:
        info = pltpu.get_tpu_info()
        cap = getattr(info, "vmem_capacity_bytes", None)
        if cap:
            return int(cap)
    except Exception:
        pass
    return 64 * 1024 * 1024


def _pick_tm(n_rows, c, x_itemsize, t_itemsize, tile_budget_bytes):
    """Largest row tile s.t. double-buffered inputs + f32 temporaries fit budget."""
    # 2 inputs x 2 pipeline buffers at native width + ~4 f32 elementwise temps.
    per_row_bytes = 2 * (x_itemsize + t_itemsize) * c + 4 * 4 * c
    tm = int(tile_budget_bytes // max(per_row_bytes, 1))
    rows_8 = ((n_rows + 7) // 8) * 8
    tm = min(tm, rows_8)          # no point exceeding the (8-aligned) row count
    if tm >= 64:
        tm -= tm % 64             # 64-row alignment -> (64, C) accumulator fold
    else:
        tm = max(8, tm - tm % 8)
    # TODO(synk): for vocab-scale C, add a second (lane) grid axis tiling C
    # instead of letting tm floor at 8 and risk exceeding the VMEM budget.
    return tm


def _ce_kernel(x_ref, t_ref, out_ref, acc_ref, *,
               n_rows, tm, cps, acc_rows, needs_mask):
    p = pl.program_id(0)   # core-split axis ("parallel")
    j = pl.program_id(1)   # row-chunk axis ("arbitrary", reduction)

    @pl.when(j == 0)
    def _():
        acc_ref[...] = jnp.zeros_like(acc_ref)

    x = jnp.clip(x_ref[...].astype(jnp.float32), 1e-9, 1.0 - 1e-9)
    t = t_ref[...].astype(jnp.float32)
    ce = -t * jnp.log(x)                      # (tm, C), f32
    c = ce.shape[-1]

    def _fold(v):
        # VPU-only partial reduce that keeps the lane dim; acc stays (acc_rows, C).
        return jnp.sum(v.reshape(tm // acc_rows, acc_rows, c), axis=0)

    if needs_mask:
        chunk = p * cps + j
        row_start = chunk * tm
        is_partial = (row_start + tm) > n_rows

        @pl.when(jnp.logical_not(is_partial))
        def _():
            acc_ref[...] += _fold(ce)

        @pl.when(is_partial)
        def _():
            # Mask rows past the end of the array (tail tile and clamped
            # overflow chunks).  jnp.where is a select, so NaN/garbage in
            # masked-out rows of the partial DMA never leaks.
            row = jax.lax.broadcasted_iota(jnp.int32, (tm, 1), 0)
            valid = row < (n_rows - row_start)
            acc_ref[...] += _fold(jnp.where(valid, ce, 0.0))
    else:
        acc_ref[...] += _fold(ce)

    @pl.when(j == pl.num_programs(1) - 1)
    def _():
        total = jnp.sum(acc_ref[...], axis=(0, 1), keepdims=True)  # (1, 1)
        out_ref[...] = total.reshape(1, 1, 1)


def cross_entropy_loss(input_probs, target, *, tm=None):
    """Pallas equivalent of CrossEntropyLoss.forward(input, target) -> scalar."""
    assert input_probs.shape == target.shape
    c = input_probs.shape[-1]
    x2 = input_probs.reshape(-1, c)
    t2 = target.reshape(-1, c)
    n_rows = x2.shape[0]

    # Generation-aware VMEM sizing (128 MiB on v5e/v6e, 64 MiB on v7x).
    vmem_cap = _vmem_capacity_bytes()
    vmem_limit = min(96 * 1024 * 1024, (vmem_cap * 3) // 4)
    tile_budget = max(4 * 1024 * 1024,
                      min(vmem_cap // 2, vmem_limit - 8 * 1024 * 1024))

    if tm is None:
        tm = _pick_tm(n_rows, c, x2.dtype.itemsize, t2.dtype.itemsize, tile_budget)
    else:
        tm = int(tm)
        assert tm > 0, "tm must be positive"
        tm = tm + (-tm) % 8       # round up to a multiple of 8

    acc_rows = 64 if tm % 64 == 0 else 8

    chunks_total = pl.cdiv(n_rows, tm)
    n_splits = 2 if chunks_total >= 2 else 1   # 2-TC megacore split on v7x
    cps = pl.cdiv(chunks_total, n_splits)      # chunks per split
    # Mask is only emitted when a partial tail chunk or a clamped overflow
    # chunk can exist.
    needs_mask = (n_rows % tm != 0) or (n_splits * cps != chunks_total)

    def in_map(p, j):
        # Clamp so an overflow chunk (odd chunk count split 2 ways) re-reads
        # the last valid block; its contribution is fully masked in-kernel.
        return (jnp.minimum(p * cps + j, chunks_total - 1), 0)

    kernel = functools.partial(_ce_kernel, n_rows=n_rows, tm=tm, cps=cps,
                               acc_rows=acc_rows, needs_mask=needs_mask)

    itot = x2.dtype.itemsize + t2.dtype.itemsize
    cost = pl.CostEstimate(
        flops=6 * n_rows * c,
        transcendentals=n_rows * c,
        bytes_accessed=n_rows * c * itot + 4 * n_splits,
    )

    partials = pl.pallas_call(
        kernel,
        out_shape=jax.ShapeDtypeStruct((n_splits, 1, 1), jnp.float32),
        grid_spec=pltpu.PrefetchScalarGridSpec(
            num_scalar_prefetch=0,
            grid=(n_splits, cps),
            in_specs=[
                pl.BlockSpec((tm, c), in_map),
                pl.BlockSpec((tm, c), in_map),
            ],
            out_specs=pl.BlockSpec((1, 1, 1), lambda p, j: (p, 0, 0)),
            scratch_shapes=[pltpu.VMEM((acc_rows, c), jnp.float32)],
        ),
        compiler_params=pltpu.CompilerParams(
            dimension_semantics=("parallel", "arbitrary"),
            vmem_limit_bytes=vmem_limit,
        ),
        cost_estimate=cost,
    )(x2, t2)

    return partials.sum() / jnp.float32(n_rows)


def _reference(input_probs, target):
    x = jnp.clip(input_probs.astype(jnp.float32), 1e-9, 1.0 - 1e-9)
    ce = -target.astype(jnp.float32) * jnp.log(x)
    return ce.sum(-1).mean()


if __name__ == "__main__":
    key = jax.random.PRNGKey(0)
    k1, k2 = jax.random.split(key)

    # small, module-consistent shapes: batch=32 rows of 128-way probability vectors
    B, C = 32, 128
    logits = jax.random.normal(k1, (B, C), dtype=jnp.float32)
    probs = jax.nn.softmax(logits, axis=-1)           # "input" (probabilities)
    labels = jax.random.randint(k2, (B,), 0, C)
    target = jax.nn.one_hot(labels, C, dtype=jnp.float32)

    loss = jax.block_until_ready(cross_entropy_loss(probs, target))
    ref = _reference(probs, target)
    assert jnp.allclose(loss, ref, rtol=1e-5, atol=1e-5), (loss, ref)

    # non-multiple-of-tile row count exercises the masked tail path
    B2, C2 = 37, 128
    probs2 = jax.nn.softmax(jax.random.normal(k1, (B2, C2), jnp.float32), axis=-1)
    target2 = jax.nn.one_hot(jax.random.randint(k2, (B2,), 0, C2), C2,
                             dtype=jnp.float32)
    loss2 = jax.block_until_ready(cross_entropy_loss(probs2, target2))
    ref2 = _reference(probs2, target2)
    assert jnp.allclose(loss2, ref2, rtol=1e-5, atol=1e-5), (loss2, ref2)

    # small manual-tm runs exercising the 2-way core split:
    #  (a) even chunk count, no masking; (b) odd chunk count + tail, so both the
    #  masked-tail branch and the clamped overflow chunk are hit.
    B3, C3 = 64, 128
    probs3 = jax.nn.softmax(jax.random.normal(k1, (B3, C3), jnp.float32), axis=-1)
    target3 = jax.nn.one_hot(jax.random.randint(k2, (B3,), 0, C3), C3,
                             dtype=jnp.float32)
    loss3 = jax.block_until_ready(cross_entropy_loss(probs3, target3, tm=16))
    ref3 = _reference(probs3, target3)
    assert jnp.allclose(loss3, ref3, rtol=1e-5, atol=1e-5), (loss3, ref3)

    B4, C4 = 70, 128
    probs4 = jax.nn.softmax(jax.random.normal(k1, (B4, C4), jnp.float32), axis=-1)
    target4 = jax.nn.one_hot(jax.random.randint(k2, (B4,), 0, C4), C4,
                             dtype=jnp.float32)
    loss4 = jax.block_until_ready(cross_entropy_loss(probs4, target4, tm=16))
    ref4 = _reference(probs4, target4)
    assert jnp.allclose(loss4, ref4, rtol=1e-5, atol=1e-5), (loss4, ref4)

    print("KERNEL_OK")
</pallas_src>

<mosaic_0001>
module attributes {stable_mosaic.version = 11 : i64} {
  func.func @_ce_kernel(%arg0: i32, %arg1: i32, %arg2: memref<32x128xf32, #tpu.memory_space<vmem>>, %arg3: memref<32x128xf32, #tpu.memory_space<vmem>>, %arg4: memref<1x1x1xf32, #tpu.memory_space<vmem>>, %arg5: memref<8x128xf32, #tpu.memory_space<vmem>>) attributes {dimension_semantics = [#tpu.dimension_semantics<parallel>, #tpu.dimension_semantics<arbitrary>], iteration_bounds = array<i64: 1, 1>, scalar_prefetch = 0 : i64, scratch_operands = 1 : i64, tpu.core_type = #tpu.core_type<tc>, window_params = [{transform_indices = @transform_0, window_bounds = array<i64: 32, 128>}, {transform_indices = @transform_1, window_bounds = array<i64: 32, 128>}, {transform_indices = @transform_2, window_bounds = array<i64: 1, 1, 1>}]} {
    %c0_i32 = arith.constant 0 : i32
    %0 = arith.cmpi eq, %arg1, %c0_i32 : i32
    %1 = arith.extui %0 : i1 to i32
    %c0_i32_0 = arith.constant 0 : i32
    %2 = arith.cmpi ne, %1, %c0_i32_0 : i32
    scf.if %2 {
      %cst_13 = arith.constant 0.000000e+00 : f32
      %21 = vector.broadcast %cst_13 : f32 to vector<8x128xf32>
      %c0_14 = arith.constant 0 : index
      %c0_15 = arith.constant 0 : index
      %22 = vector.load %arg5[%c0_14, %c0_15] : memref<8x128xf32, #tpu.memory_space<vmem>>, vector<8x128xf32>
      tpu.vector_store %arg5[%c0_14, %c0_15], %21 {strides = array<i32>} : memref<8x128xf32, #tpu.memory_space<vmem>>, vector<8x128xf32>,
    } else {
    }
    %c0 = arith.constant 0 : index
    %c0_1 = arith.constant 0 : index
    %3 = vector.load %arg2[%c0, %c0_1] : memref<32x128xf32, #tpu.memory_space<vmem>>, vector<32x128xf32>
    %cst = arith.constant 9.99999971E-10 : f32
    %cst_2 = arith.constant 1.000000e+00 : f32
    %4 = vector.broadcast %cst : f32 to vector<32x128xf32>
    %5 = arith.maximumf %4, %3 : vector<32x128xf32>
    %6 = vector.broadcast %cst_2 : f32 to vector<32x128xf32>
    %7 = arith.minimumf %6, %5 : vector<32x128xf32>
    %c0_3 = arith.constant 0 : index
    %c0_4 = arith.constant 0 : index
    %8 = vector.load %arg3[%c0_3, %c0_4] : memref<32x128xf32, #tpu.memory_space<vmem>>, vector<32x128xf32>
    %cst_5 = arith.constant 0.000000e+00 : f32
    %9 = vector.broadcast %cst_5 : f32 to vector<32x128xf32>
    %10 = arith.subf %9, %8 : vector<32x128xf32>
    %11 = math.log %7 : vector<32x128xf32>
    %12 = arith.mulf %10, %11 : vector<32x128xf32>
    %c0_6 = arith.constant 0 : index
    %c0_7 = arith.constant 0 : index
    %13 = vector.load %arg5[%c0_6, %c0_7] : memref<8x128xf32, #tpu.memory_space<vmem>>, vector<8x128xf32>
    %14 = vector.shape_cast %12 : vector<32x128xf32> to vector<4x8x128xf32>
    %cst_8 = arith.constant dense<0.000000e+00> : vector<8x128xf32>
    %15 = vector.multi_reduction <add>, %14, %cst_8 [0] : vector<4x8x128xf32> to vector<8x128xf32>
    %16 = arith.addf %13, %15 : vector<8x128xf32>
    %c0_9 = arith.constant 0 : index
    %c0_10 = arith.constant 0 : index
    %17 = vector.load %arg5[%c0_9, %c0_10] : memref<8x128xf32, #tpu.memory_space<vmem>>, vector<8x128xf32>
    tpu.vector_store %arg5[%c0_9, %c0_10], %16 {strides = array<i32>} : memref<8x128xf32, #tpu.memory_space<vmem>>, vector<8x128xf32>,
    %c0_i32_11 = arith.constant 0 : i32
    %18 = arith.cmpi eq, %arg1, %c0_i32_11 : i32
    %19 = arith.extui %18 : i1 to i32
    %c0_i32_12 = arith.constant 0 : i32
    %20 = arith.cmpi ne, %19, %c0_i32_12 : i32
    scf.if %20 {
      %c0_13 = arith.constant 0 : index
      %c0_14 = arith.constant 0 : index
      %21 = vector.load %arg5[%c0_13, %c0_14] : memref<8x128xf32, #tpu.memory_space<vmem>>, vector<8x128xf32>
      %22 = vector.shape_cast %21 : vector<8x128xf32> to vector<1x8x128xf32>
      %cst_15 = arith.constant dense<0.000000e+00> : vector<1xf32>
      %23 = vector.multi_reduction <add>, %22, %cst_15 [1, 2] : vector<1x8x128xf32> to vector<1xf32>
      %24 = vector.shape_cast %23 : vector<1xf32> to vector<1x1x1xf32>
      %25 = vector.extract %24[0, 0, 0] : f32 from vector<1x1x1xf32>
      %26 = vector.broadcast %25 : f32 to vector<1x1xf32>
      %27 = vector.shape_cast %26 : vector<1x1xf32> to vector<1x1x1xf32>
      %c0_16 = arith.constant 0 : index
      %c0_17 = arith.constant 0 : index
      %c0_18 = arith.constant 0 : index
      %28 = vector.load %arg4[%c0_16, %c0_17, %c0_18] : memref<1x1x1xf32, #tpu.memory_space<vmem>>, vector<1x1x1xf32>
      tpu.vector_store %arg4[%c0_16, %c0_17, %c0_18], %27 {strides = array<i32>} : memref<1x1x1xf32, #tpu.memory_space<vmem>>, vector<1x1x1xf32>,
    } else {
    }
    return
  }
  func.func @transform_0(%arg0: i32, %arg1: i32) -> (i32, i32) {
    %c1_i32 = arith.constant 1 : i32
    %0 = arith.muli %arg0, %c1_i32 : i32
    %1 = arith.addi %0, %arg1 : i32
    %c0_i32 = arith.constant 0 : i32
    %2 = arith.minsi %1, %c0_i32 : i32
    %c0_i32_0 = arith.constant 0 : i32
    %c0_i32_1 = arith.constant 0 : i32
    return %2, %c0_i32_0 : i32, i32
  }
  func.func @transform_1(%arg0: i32, %arg1: i32) -> (i32, i32) {
    %c1_i32 = arith.constant 1 : i32
    %0 = arith.muli %arg0, %c1_i32 : i32
    %1 = arith.addi %0, %arg1 : i32
    %c0_i32 = arith.constant 0 : i32
    %2 = arith.minsi %1, %c0_i32 : i32
    %c0_i32_0 = arith.constant 0 : i32
    %c0_i32_1 = arith.constant 0 : i32
    return %2, %c0_i32_0 : i32, i32
  }
  func.func @transform_2(%arg0: i32, %arg1: i32) -> (i32, i32, i32) {
    %c0_i32 = arith.constant 0 : i32
    %c0_i32_0 = arith.constant 0 : i32
    %c0_i32_1 = arith.constant 0 : i32
    return %arg0, %c0_i32, %c0_i32_0 : i32, i32, i32
  }
}

</mosaic_0001>

<llo_original>
// kernel: tpu_custom_call.1
$region0: #{tpu_custom_call.1}
  #allocation0 [shape = 'u32[]', space=smem, size = 0x4, offset = 0x4, fixed_abs, tag = 'smem constant byte address 0x4 - core index']
  #allocation1 [shape = 'u32[72,128]{1,0:T(1,128)}', space=vmem, size = 0x9000, scoped, tag = 'internal scratch']
  #allocation2 [shape = 'f32[8,128]{1,0:T(8,128)}', space=vmem, size = 0x1000, scoped, tag = 'scratch operand']
  %s0 = inlined_call_operand.hbm [shape: f32[32,128], index: 0, kind: input, shape index: {}]
  %s1 = inlined_call_operand.hbm [shape: f32[32,128], index: 1, kind: input, shape index: {}]
  %s2 = inlined_call_operand.hbm [shape: f32[1,1,1], index: 2, kind: output, shape index: {}]
  %s3 = sld [smem:[#allocation0]]
  $region34: #{tpu_custom_call.1} parent=0
    _
  %s5 = ssub.s32 1, %s3
  %s6 = scalar_select 0, %s5, %s3
  $region1: #{tpu_custom_call.1} parent=0
    #allocation3 [shape = 'u8[16384]{0}', space=vmem, size = 0x4000, scoped, tag = 'input window, operand 0, single buffered']
    #allocation4 [shape = 's32[1]{0}', space=sflag, size = 0x4, scoped, tag = 'scoped memory for tpu_custom_call.1']
    #allocation5 [shape = 's32[1]{0}', space=sflag, size = 0x4, scoped, tag = 'scoped memory for tpu_custom_call.1']
    #allocation6 [shape = 'u8[16384]{0}', space=vmem, size = 0x4000, scoped, tag = 'input window, operand 1, single buffered']
    #allocation7 [shape = 's32[1]{0}', space=sflag, size = 0x4, scoped, tag = 'scoped memory for tpu_custom_call.1']
    #allocation8 [shape = 'u8[512]{0}', space=vmem, size = 0x400, scoped, tag = 'output window, operand 0, single buffered']
    %7 = vsyncpa [#allocation4], 0
    %8 = vsyncpa [#allocation7], 0
    %9 = vsyncpa [#allocation5], 0
    // Predicated region
    $region2: #{tpu_custom_call.1} parent=1 // pred_check
      _
    $region3: #{tpu_custom_call.1} parent=1 // pred_check_branch
      %11 = sbr.rel (0) target = $region5
    $region4: #{tpu_custom_call.1} parent=1 // pred_region
      %s12 = sadd.s32 0, 0
      %p13 = scmp.lt.s32.totalorder %s12, 0
      %s14 = scalar_select %p13, %s12, 0
      %s15 = smul.u32 4, %s14
      %17 = vsyncadd [#allocation4], 0
      %s18 = smul.addr %s15, 8
      %s19 = scalar_lea.hbm %s0, %s18
      %s20 = sshll.u32 %s19, 4
      %s21 = int_to_ptr.hbm [resolvable:$true] %s20
      %s22 = sshll.u32 [#allocation3], 4
      %s23 = int_to_ptr.vmem [resolvable:$true] %s22
      %28 = dma.hbm_to_vmem [thread:$0]  %s21, 512, %s23, [#allocation4], 128, 128, 8
    $region5: #{tpu_custom_call.1} parent=1 // pred_fallthru
      _
    // Predicated region
    $region6: #{tpu_custom_call.1} parent=1 // pred_check
      _
    $region7: #{tpu_custom_call.1} parent=1 // pred_check_branch
      %30 = sbr.rel (0) target = $region9
    $region8: #{tpu_custom_call.1} parent=1 // pred_region
      %s31 = sadd.s32 0, 0
      %p32 = scmp.lt.s32.totalorder %s31, 0
      %s33 = scalar_select %p32, %s31, 0
      %s34 = smul.u32 4, %s33
      %36 = vsyncadd [#allocation7], 0
      %s37 = smul.addr %s34, 8
      %s38 = scalar_lea.hbm %s1, %s37
      %s39 = sshll.u32 %s38, 4
      %s40 = int_to_ptr.hbm [resolvable:$true] %s39
      %s41 = sshll.u32 [#allocation6], 4
      %s42 = int_to_ptr.vmem [resolvable:$true] %s41
      %47 = dma.hbm_to_vmem [thread:$0]  %s40, 512, %s42, [#allocation7], 128, 128, 8
    $region9: #{tpu_custom_call.1} parent=1 // pred_fallthru
      _
    // Predicated region
    $region10: #{tpu_custom_call.1} parent=1 // pred_check
      _
    $region11: #{tpu_custom_call.1} parent=1 // pred_check_branch
      %49 = sbr.rel (0) target = $region13
    $region12: #{tpu_custom_call.1} parent=1 // pred_region
      %51 = dma.done [#allocation4], 512
    $region13: #{tpu_custom_call.1} parent=1 // pred_fallthru
      _
    // Predicated region
    $region14: #{tpu_custom_call.1} parent=1 // pred_check
      _
    $region15: #{tpu_custom_call.1} parent=1 // pred_check_branch
      %53 = sbr.rel (0) target = $region17
    $region16: #{tpu_custom_call.1} parent=1 // pred_region
      %55 = dma.done [#allocation7], 512
    $region17: #{tpu_custom_call.1} parent=1 // pred_fallthru
      _
    %s56 = sadd.s32 0, 0
    %p57 = scmp.lt.s32.totalorder %s56, 0
    %s58 = scalar_select %p57, %s56, 0
    %s59 = smul.u32 4, %s58
    %s60 = sadd.s32 0, 0
    %p61 = scmp.lt.s32.totalorder %s60, 0
    %s62 = scalar_select %p61, %s60, 0
    %s63 = smul.u32 4, %s62
    %p64 = scmp.eq.s32.totalorder 0, 0
    // Predicated region
    $region18: #{tpu_custom_call.1} parent=1 // pred_check
      %p65 = pneg %p64
    $region19: #{tpu_custom_call.1} parent=1 // pred_check_branch
      %67 = sbr.rel (%p65) target = $region21
    $region20: #{tpu_custom_call.1} parent=1 // pred_region
      %68 = vst [vmem:[#allocation2] sm:$0xff] 0.0
    $region21: #{tpu_custom_call.1} parent=1 // pred_fallthru
      _
    %v69 = vld [vmem:[#allocation3] sm:$0xff]
    %v70 = vld [vmem:[#allocation3 + $0x8] sm:$0xff]
    %v71 = vld [vmem:[#allocation3 + $0x10] sm:$0xff]
    %v72 = vld [vmem:[#allocation3 + $0x18] sm:$0xff]
    %v73 = vmax.f32 %v69, 1e-09
    %v74 = vmax.f32 %v70, 1e-09
    %v75 = vmax.f32 %v71, 1e-09
    %v76 = vmax.f32 %v72, 1e-09
    %v77 = vmin.f32 %v73, 1.0
    %v78 = vmin.f32 %v74, 1.0
    %v79 = vmin.f32 %v75, 1.0
    %v80 = vmin.f32 %v76, 1.0
    %v81 = vld [vmem:[#allocation6] sm:$0xff]
    %v82 = vld [vmem:[#allocation6 + $0x8] sm:$0xff]
    %v83 = vld [vmem:[#allocation6 + $0x10] sm:$0xff]
    %v84 = vld [vmem:[#allocation6 + $0x18] sm:$0xff]
    %v85 = vsub.f32 0.0, %v81
    %v86 = vsub.f32 0.0, %v82
    %v87 = vsub.f32 0.0, %v83
    %v88 = vsub.f32 0.0, %v84
    %v89 = vlog2.pop %v77
    %v90 = vmul.f32 %v89, 0.6931472
    %v91 = vlog2.pop %v78
    %v92 = vmul.f32 %v91, 0.6931472
    %v93 = vlog2.pop %v79
    %v94 = vmul.f32 %v93, 0.6931472
    %v95 = vlog2.pop %v80
    %v96 = vmul.f32 %v95, 0.6931472
    %v97 = vmul.f32 %v85, %v90
    %v98 = vmul.f32 %v86, %v92
    %v99 = vmul.f32 %v87, %v94
    %v100 = vmul.f32 %v88, %v96
    %v101 = vld [vmem:[#allocation2] sm:$0xff]
    %v102 = vadd.f32 %v97, %v98
    %v103 = vadd.f32 %v102, %v99
    %v104 = vadd.f32 %v103, %v100
    %v105 = vadd.f32 %v101, %v104
    %106 = vst [vmem:[#allocation2] sm:$0xff] %v105
    // Predicated region
    $region22: #{tpu_custom_call.1} parent=1 // pred_check
      %p107 = pneg %p64
    $region23: #{tpu_custom_call.1} parent=1 // pred_check_branch
      %109 = sbr.rel (%p107) target = $region25
    $region24: #{tpu_custom_call.1} parent=1 // pred_region
      %v110 = vld [vmem:[#allocation2] sm:$0xff]
      %111 = vadd.xlane.f32.xlu0 %v110
      %v112 = vpop.xlane.xlu0 %111
      %v113 = vrot.slane %v112, 4
      %v114 = vadd.f32 %v112, %v113
      %v115 = vrot.slane %v114, 2
      %v116 = vadd.f32 %v114, %v115
      %v117 = vrot.slane %v116, 1
      %v118 = vadd.f32 %v116, %v117
      %s119 = vtos %v118
      %v120 = vstv %s119
      %vm121 = vcmask 0
      %122 = vst.msk [vmem:[#allocation8] sm:$0x1] %vm121, %v120
    $region25: #{tpu_custom_call.1} parent=1 // pred_fallthru
      _
    // Predicated region
    $region26: #{tpu_custom_call.1} parent=1 // pred_check
      _
    $region27: #{tpu_custom_call.1} parent=1 // pred_check_branch
      %124 = sbr.rel (0) target = $region29
    $region28: #{tpu_custom_call.1} parent=1 // pred_region
      %126 = vsyncadd [#allocation5], 0
      %s128 = sshll.u32 [#allocation8], 4
      %s129 = int_to_ptr.vmem [resolvable:$true] %s128
      %s130 = sshll.u32 %s2, 4
      %s131 = int_to_ptr.hbm [resolvable:$true] %s130
      %133 = dma.vmem_to_hbm [thread:$0]  %s129, 16, %s131, [#allocation5]
    $region29: #{tpu_custom_call.1} parent=1 // pred_fallthru
      _
    // Predicated region
    $region30: #{tpu_custom_call.1} parent=1 // pred_check
      _
    $region31: #{tpu_custom_call.1} parent=1 // pred_check_branch
      %135 = sbr.rel (0) target = $region33
    $region32: #{tpu_custom_call.1} parent=1 // pred_region
      %137 = dma.done [#allocation5], 16
    $region33: #{tpu_custom_call.1} parent=1 // pred_fallthru
      _
    %138 = vsyncpa [#allocation4], 1
    %139 = vsyncpa [#allocation7], 1
    %140 = vsyncpa [#allocation5], 1

</llo_original>
